<compile_context>
chip_gen: v5e
topology: v5e:2x2
jax: 0.10.0
libtpu: 0.0.40
codegen_flags: <defaults>
</compile_context>

<pallas_src>
import numpy as np
import jax
import jax.numpy as jnp
from jax.experimental import pallas as pl
from jax.experimental.pallas import tpu as pltpu

# ---- problem constants (from the reference module) --------------------------
SAMPLE_RATE = 44100
DURATION = 0.01
N_SAMP = int(SAMPLE_RATE * DURATION)      # 441 time samples
F_LO, F_HI = 420, 900
N_FREQ = F_HI - F_LO                      # 480 probe frequencies
T_PAD = 512                               # padded contraction dim
F_PAD = 512                               # padded probe-frequency dim (4 lane-vregs)
LANE_CHUNK = 128                          # one lane-vreg worth of frequencies
LANE_MASK = F_PAD - 1                     # 9 low bits hold the lane index
HI_MASK = ~LANE_MASK                      # clears the low 9 mantissa bits
HEIGHT_THRESH = 0.1
SIGMA = 100.0
N_DISS = 13                               # num_keys_apart ranges 0..12
DISS_PAD = 16                             # lane-padded dissonance table


def consonance_kernel(y_ref, w_ref, lane_ref, nlogd_ref, out_ref, ybuf_ref):
    # ---- in-kernel pad (441 -> 512) + f32 -> bf16 cast of the batch tile -----
    # Scratch is fully rewritten every step, so it is safe under megacore
    # ("parallel") grid splitting.
    ybuf_ref[:, :N_SAMP] = y_ref[...].astype(jnp.bfloat16)
    ybuf_ref[:, N_SAMP:] = jnp.zeros(
        (ybuf_ref.shape[0], T_PAD - N_SAMP), dtype=jnp.bfloat16)

    # ---- spectrum: one (TB,512)x(512,512) bf16 MXU dot, f32 accumulation -----
    spec = jnp.dot(ybuf_ref[...], w_ref[...],
                   preferred_element_type=jnp.float32)             # (TB, F_PAD)

    # ---- strict local maxima (scipy find_peaks interior condition) -----------
    # XLU lane-rotates; shift F_PAD-1 == shift -1.  Wrapped lanes only affect
    # lane 0 / 511, both excluded via the lane table.
    prev = pltpu.roll(spec, shift=1, axis=1)
    nxt = pltpu.roll(spec, shift=F_PAD - 1, axis=1)
    is_max = spec > jnp.maximum(prev, nxt)

    # ---- pack (height, lane) into one orderable int32 key --------------------
    # Positive f32 heights order like int32; clearing the low 9 mantissa bits
    # (relative error < 2^-14) makes room for the lane index.  Excluded lanes
    # (0, 479..511) carry -1 in the lane table, so the OR yields -1 there.
    spec_bits = jax.lax.bitcast_convert_type(spec, jnp.int32)
    key = jnp.where(is_max,
                    (spec_bits & jnp.int32(HI_MASK)) | lane_ref[...],
                    jnp.int32(-1))

    # ---- top-2: chunked (best, second) pair-combine + two 128-lane reductions
    c0 = key[:, 0 * LANE_CHUNK:1 * LANE_CHUNK]
    c1 = key[:, 1 * LANE_CHUNK:2 * LANE_CHUNK]
    c2 = key[:, 2 * LANE_CHUNK:3 * LANE_CHUNK]
    c3 = key[:, 3 * LANE_CHUNK:4 * LANE_CHUNK]
    b01 = jnp.maximum(c0, c1)
    s01 = jnp.minimum(c0, c1)
    b23 = jnp.maximum(c2, c3)
    s23 = jnp.minimum(c2, c3)
    best = jnp.maximum(b01, b23)                                    # (TB, 128)
    seco = jnp.maximum(jnp.minimum(b01, b23), jnp.maximum(s01, s23))
    k1 = jnp.max(best, axis=1, keepdims=True)                       # (TB, 1)
    # Keys are unique (lane id in low bits), so replacing the single argmax lane
    # with its local "second" and re-reducing yields the global second.
    k2 = jnp.max(jnp.where(best == k1, seco, best), axis=1, keepdims=True)

    # ---- unpack heights / indices, apply the deferred height threshold -------
    hi = jnp.int32(HI_MASK)
    i1 = (k1 & jnp.int32(LANE_MASK)).astype(jnp.float32)
    i2 = (k2 & jnp.int32(LANE_MASK)).astype(jnp.float32)
    h1 = jax.lax.bitcast_convert_type(k1 & hi, jnp.float32)
    h2 = jax.lax.bitcast_convert_type(k2 & hi, jnp.float32)
    valid = (k2 >= 0) & (h2 >= HEIGHT_THRESH)     # h1 >= h2, so h1 passes too

    # peak "frequency" = 440 + spec index (reproducing the reference code)
    p1 = 440.0 + i1
    p2 = 440.0 + i2
    nkeys = (jnp.abs(jnp.log2(p2 / p1)) * 12.0).astype(jnp.int32)   # trunc == int()
    nkeys = jnp.minimum(nkeys, N_DISS - 1)

    # ---- -log(dissonance) lookup: one-hot select over the tiny resident table
    didx = jax.lax.broadcasted_iota(jnp.int32, (1, DISS_PAD), 1)
    cons1 = jnp.sum(jnp.where(didx == nkeys, nlogd_ref[...], 0.0),
                    axis=1, keepdims=True)                          # (TB, 1)

    inv_sigma2 = jnp.float32(1.0 / (SIGMA * SIGMA))
    amax = jnp.maximum(h1, h2)
    cons2 = jnp.exp(-((h1 - h2) ** 2 + (220.0 - amax) ** 2) * inv_sigma2)

    # TODO(synk): rows with < 2 qualifying peaks would crash the scipy-based
    # reference; here they deterministically produce 0.0.
    out_ref[...] = jnp.where(valid, cons1 * cons2,
                             jnp.float32(0.0)).astype(out_ref.dtype)


def _round_up(x, m):
    return ((x + m - 1) // m) * m


def _choose_batch_tile(B, batch_tile):
    b16 = _round_up(B, 16)                 # bf16 sublane packing
    tb = _round_up(min(int(batch_tile), b16), 16)
    # Keep >= 2 grid steps when the batch allows it (v7x megacore split) and
    # avoid padding a mid-sized batch up to one oversized tile.
    if b16 >= 32 and b16 // tb < 2:
        tb = _round_up(b16 // 2, 16)
    return tb


def new_consonance_forward(Y, W_bf16, lane_tbl, neg_log_diss, *, batch_tile=512):
    """Y: (B, 441) float; W_bf16: (512, 512) bf16; lane_tbl: (1, 512) int32;
    neg_log_diss: (1, 16) f32 (= -log(dissonance_vals), lane-padded) -> (B, 1) f32."""
    Y = jnp.asarray(Y, dtype=jnp.float32)
    B = Y.shape[0]
    TB = _choose_batch_tile(B, batch_tile)
    Bp = _round_up(B, TB)
    # Only the batch axis is padded (zero rows -> no peaks -> output 0, sliced off).
    Yp = Y if Bp == B else jnp.pad(Y, ((0, Bp - B), (0, 0)))

    cost = pl.CostEstimate(
        flops=2 * Bp * T_PAD * F_PAD,
        transcendentals=2 * Bp,
        bytes_accessed=Yp.size * 4 + W_bf16.size * 2 + lane_tbl.size * 4
        + neg_log_diss.size * 4 + Bp * 4,
    )

    out = pl.pallas_call(
        consonance_kernel,
        out_shape=jax.ShapeDtypeStruct((Bp, 1), jnp.float32),
        grid=(Bp // TB,),
        in_specs=[
            pl.BlockSpec((TB, N_SAMP), lambda i: (i, 0)),     # raw f32 rows, pipelined
            pl.BlockSpec((T_PAD, F_PAD), lambda i: (0, 0)),   # probe matrix, resident
            pl.BlockSpec((1, F_PAD), lambda i: (0, 0)),       # lane / exclusion table
            pl.BlockSpec((1, DISS_PAD), lambda i: (0, 0)),    # -log(dissonance) table
        ],
        out_specs=pl.BlockSpec((TB, 1), lambda i: (i, 0)),
        scratch_shapes=[pltpu.VMEM((TB, T_PAD), jnp.bfloat16)],  # padded bf16 Y tile
        compiler_params=pltpu.CompilerParams(dimension_semantics=("parallel",)),
        cost_estimate=cost,
    )(Yp, W_bf16, lane_tbl, neg_log_diss)
    return out[:B]


def build_probe_matrix():
    """W[:, j] = sin(2*pi*(420+j)*t), matching get_combined_sine_wave([f], [1], 0.01).

    Built in float64 on the host, zero-padded to (512, 512), cast to bf16 for the
    MXU (accumulation stays f32 in-kernel)."""
    t = np.linspace(0.0, DURATION, N_SAMP)               # 441 samples, endpoint included
    freqs = np.arange(F_LO, F_HI, 1.0)                   # 480 probe frequencies
    W = np.sin(2.0 * np.pi * np.outer(t, freqs))
    Wp = np.zeros((T_PAD, F_PAD), dtype=np.float32)
    Wp[:N_SAMP, :N_FREQ] = W
    return jnp.asarray(Wp, dtype=jnp.bfloat16), t


def build_lane_table():
    """Lane index for valid interior lanes (1..478), -1 for excluded / padded lanes."""
    lanes = np.arange(F_PAD, dtype=np.int32)
    lanes[0] = -1                  # find_peaks excludes the first point
    lanes[N_FREQ - 1:] = -1        # last real point (endpoint) + zero padding excluded
    return jnp.asarray(lanes.reshape(1, F_PAD))


def build_neg_log_diss(dissonance_vals):
    """-log(dissonance_vals) precomputed on the host, lane-padded to 16."""
    tbl = np.zeros((1, DISS_PAD), dtype=np.float32)
    tbl[0, :N_DISS] = -np.log(np.asarray(dissonance_vals, dtype=np.float64))
    return jnp.asarray(tbl)


if __name__ == "__main__":
    # Deterministic parameters (synthetic, in lieu of a checkpoint).
    dissonance_vals = np.linspace(0.1, 0.9, N_DISS)      # positive -> -log well defined
    neg_log_diss = build_neg_log_diss(dissonance_vals)
    lane_tbl = build_lane_table()
    W_bf16, t = build_probe_matrix()

    # Deterministic example inputs: B=4 signals of length 441, each a sum of two
    # sine tones well inside the 420-899 Hz probe band (so the short-window
    # spectrum has two distinct peaks) plus small noise.
    key = jax.random.PRNGKey(0)
    k_amp, k_noise = jax.random.split(key)
    B = 4
    freq_pairs = jnp.asarray(
        [[450.0, 700.0], [470.0, 820.0], [500.0, 760.0], [455.0, 680.0]],
        dtype=jnp.float32,
    )
    amps = 0.8 + 0.4 * jax.random.uniform(k_amp, (B, 2), dtype=jnp.float32)
    noise = 0.01 * jax.random.normal(k_noise, (B, N_SAMP), dtype=jnp.float32)
    tj = jnp.asarray(t, dtype=jnp.float32)[None, :]      # (1, 441)

    Y = (
        amps[:, 0:1] * jnp.sin(2.0 * jnp.pi * freq_pairs[:, 0:1] * tj)
        + amps[:, 1:2] * jnp.sin(2.0 * jnp.pi * freq_pairs[:, 1:2] * tj)
        + noise
    ).astype(jnp.float32)                                 # (B, 441)

    out = new_consonance_forward(Y, W_bf16, lane_tbl, neg_log_diss)
    out = jax.block_until_ready(out)

    assert out.shape == (B, 1), out.shape
    assert bool(jnp.all(jnp.isfinite(out))), out
    print("KERNEL_OK")
</pallas_src>

<mosaic_0001>
module attributes {stable_mosaic.version = 11 : i64} {
  func.func @consonance_kernel(%arg0: i32, %arg1: memref<16x441xf32, #tpu.memory_space<vmem>>, %arg2: memref<512x512xbf16, #tpu.memory_space<vmem>>, %arg3: memref<1x512xi32, #tpu.memory_space<vmem>>, %arg4: memref<1x16xf32, #tpu.memory_space<vmem>>, %arg5: memref<16x1xf32, #tpu.memory_space<vmem>>, %arg6: memref<16x512xbf16, #tpu.memory_space<vmem>>) attributes {dimension_semantics = [#tpu.dimension_semantics<parallel>], iteration_bounds = array<i64: 1>, scalar_prefetch = 0 : i64, scratch_operands = 1 : i64, tpu.core_type = #tpu.core_type<tc>, window_params = [{transform_indices = @transform_0, window_bounds = array<i64: 16, 441>}, {pipeline_mode = #tpu.pipeline_mode<synchronous>, transform_indices = @transform_1, window_bounds = array<i64: 512, 512>}, {pipeline_mode = #tpu.pipeline_mode<synchronous>, transform_indices = @transform_2, window_bounds = array<i64: 1, 512>}, {pipeline_mode = #tpu.pipeline_mode<synchronous>, transform_indices = @transform_3, window_bounds = array<i64: 1, 16>}, {transform_indices = @transform_4, window_bounds = array<i64: 16, 1>}]} {
    %c0 = arith.constant 0 : index
    %c0_0 = arith.constant 0 : index
    %0 = vector.load %arg1[%c0, %c0_0] : memref<16x441xf32, #tpu.memory_space<vmem>>, vector<16x441xf32>
    %1 = arith.truncf %0 : vector<16x441xf32> to vector<16x441xbf16>
    %c0_1 = arith.constant 0 : index
    %c0_2 = arith.constant 0 : index
    %2 = vector.load %arg6[%c0_1, %c0_2] : memref<16x512xbf16, #tpu.memory_space<vmem>>, vector<16x441xbf16>
    tpu.vector_store %arg6[%c0_1, %c0_2], %1 {strides = array<i32>} : memref<16x512xbf16, #tpu.memory_space<vmem>>, vector<16x441xbf16>,
    %cst = arith.constant 0.000000e+00 : bf16
    %3 = vector.broadcast %cst : bf16 to vector<16x71xbf16>
    %c0_3 = arith.constant 0 : index
    %c441 = arith.constant 441 : index
    %4 = vector.load %arg6[%c0_3, %c441] : memref<16x512xbf16, #tpu.memory_space<vmem>>, vector<16x71xbf16>
    tpu.vector_store %arg6[%c0_3, %c441], %3 {strides = array<i32>} : memref<16x512xbf16, #tpu.memory_space<vmem>>, vector<16x71xbf16>,
    %c0_4 = arith.constant 0 : index
    %c0_5 = arith.constant 0 : index
    %5 = vector.load %arg6[%c0_4, %c0_5] : memref<16x512xbf16, #tpu.memory_space<vmem>>, vector<16x512xbf16>
    %c0_6 = arith.constant 0 : index
    %c0_7 = arith.constant 0 : index
    %6 = vector.load %arg2[%c0_6, %c0_7] : memref<512x512xbf16, #tpu.memory_space<vmem>>, vector<512x512xbf16>
    %cst_8 = arith.constant dense<0.000000e+00> : vector<16x512xf32>
    %7 = tpu.matmul %5, %6, %cst_8 {dimension_numbers = #tpu.dot_dimension_numbers<[1], [0], [0], [1], [0, 0, 1, 1], [], []>} : vector<16x512xbf16>, vector<512x512xbf16>, vector<16x512xf32> -> vector<16x512xf32>
    %c1_i32 = arith.constant 1 : i32
    %8 = tpu.dynamic_rotate %7 by %c1_i32 dim 1 : vector<16x512xf32>, i32 -> vector<16x512xf32>
    %c511_i32 = arith.constant 511 : i32
    %9 = tpu.dynamic_rotate %7 by %c511_i32 dim 1 : vector<16x512xf32>, i32 -> vector<16x512xf32>
    %10 = arith.maximumf %8, %9 : vector<16x512xf32>
    %11 = arith.cmpf ogt, %7, %10 : vector<16x512xf32>
    %12 = tpu.bitcast %7 : vector<16x512xf32> -> vector<16x512xi32>
    %c-512_i32 = arith.constant -512 : i32
    %13 = vector.broadcast %c-512_i32 : i32 to vector<16x512xi32>
    %14 = arith.andi %12, %13 : vector<16x512xi32>
    %c0_9 = arith.constant 0 : index
    %c0_10 = arith.constant 0 : index
    %15 = vector.load %arg3[%c0_9, %c0_10] : memref<1x512xi32, #tpu.memory_space<vmem>>, vector<1x512xi32>
    %16 = vector.broadcast %15 : vector<1x512xi32> to vector<16x512xi32>
    %17 = arith.ori %14, %16 : vector<16x512xi32>
    %c-1_i32 = arith.constant -1 : i32
    %18 = vector.broadcast %c-1_i32 : i32 to vector<16x512xi32>
    %19 = arith.select %11, %17, %18 : vector<16x512xi1>, vector<16x512xi32>
    %20 = vector.extract_strided_slice %19 {offsets = [0, 0], sizes = [16, 128], strides = [1, 1]} : vector<16x512xi32> to vector<16x128xi32>
    %21 = vector.extract_strided_slice %19 {offsets = [0, 128], sizes = [16, 128], strides = [1, 1]} : vector<16x512xi32> to vector<16x128xi32>
    %22 = vector.extract_strided_slice %19 {offsets = [0, 256], sizes = [16, 128], strides = [1, 1]} : vector<16x512xi32> to vector<16x128xi32>
    %23 = vector.extract_strided_slice %19 {offsets = [0, 384], sizes = [16, 128], strides = [1, 1]} : vector<16x512xi32> to vector<16x128xi32>
    %24 = arith.maxsi %20, %21 : vector<16x128xi32>
    %25 = arith.minsi %20, %21 : vector<16x128xi32>
    %26 = arith.maxsi %22, %23 : vector<16x128xi32>
    %27 = arith.minsi %22, %23 : vector<16x128xi32>
    %28 = arith.maxsi %24, %26 : vector<16x128xi32>
    %29 = arith.minsi %24, %26 : vector<16x128xi32>
    %30 = arith.maxsi %25, %27 : vector<16x128xi32>
    %31 = arith.maxsi %29, %30 : vector<16x128xi32>
    %cst_11 = arith.constant dense<-2147483648> : vector<16xi32>
    %32 = vector.multi_reduction <maxsi>, %28, %cst_11 [1] : vector<16x128xi32> to vector<16xi32>
    %33 = vector.shape_cast %32 : vector<16xi32> to vector<16x1xi32>
    %34 = vector.broadcast %33 : vector<16x1xi32> to vector<16x128xi32>
    %35 = arith.cmpi eq, %28, %34 : vector<16x128xi32>
    %36 = arith.select %35, %31, %28 : vector<16x128xi1>, vector<16x128xi32>
    %cst_12 = arith.constant dense<-2147483648> : vector<16xi32>
    %37 = vector.multi_reduction <maxsi>, %36, %cst_12 [1] : vector<16x128xi32> to vector<16xi32>
    %38 = vector.shape_cast %37 : vector<16xi32> to vector<16x1xi32>
    %c511_i32_13 = arith.constant 511 : i32
    %39 = vector.broadcast %c511_i32_13 : i32 to vector<16x1xi32>
    %40 = arith.andi %33, %39 : vector<16x1xi32>
    %41 = arith.sitofp %40 : vector<16x1xi32> to vector<16x1xf32>
    %c511_i32_14 = arith.constant 511 : i32
    %42 = vector.broadcast %c511_i32_14 : i32 to vector<16x1xi32>
    %43 = arith.andi %38, %42 : vector<16x1xi32>
    %44 = arith.sitofp %43 : vector<16x1xi32> to vector<16x1xf32>
    %c-512_i32_15 = arith.constant -512 : i32
    %45 = vector.broadcast %c-512_i32_15 : i32 to vector<16x1xi32>
    %46 = arith.andi %33, %45 : vector<16x1xi32>
    %47 = tpu.bitcast %46 : vector<16x1xi32> -> vector<16x1xf32>
    %c-512_i32_16 = arith.constant -512 : i32
    %48 = vector.broadcast %c-512_i32_16 : i32 to vector<16x1xi32>
    %49 = arith.andi %38, %48 : vector<16x1xi32>
    %50 = tpu.bitcast %49 : vector<16x1xi32> -> vector<16x1xf32>
    %c0_i32 = arith.constant 0 : i32
    %51 = vector.broadcast %c0_i32 : i32 to vector<16x1xi32>
    %52 = arith.cmpi sge, %38, %51 : vector<16x1xi32>
    %cst_17 = arith.constant 1.000000e-01 : f32
    %53 = vector.broadcast %cst_17 : f32 to vector<16x1xf32>
    %54 = arith.cmpf oge, %50, %53 : vector<16x1xf32>
    %55 = arith.andi %52, %54 : vector<16x1xi1>
    %cst_18 = arith.constant 4.400000e+02 : f32
    %56 = vector.broadcast %cst_18 : f32 to vector<16x1xf32>
    %57 = arith.addf %56, %41 : vector<16x1xf32>
    %cst_19 = arith.constant 4.400000e+02 : f32
    %58 = vector.broadcast %cst_19 : f32 to vector<16x1xf32>
    %59 = arith.addf %58, %44 : vector<16x1xf32>
    %60 = arith.divf %59, %57 : vector<16x1xf32>
    %61 = math.log %60 : vector<16x1xf32>
    %cst_20 = arith.constant 2.000000e+00 : f32
    %62 = math.log %cst_20 : f32
    %63 = vector.broadcast %62 : f32 to vector<16x1xf32>
    %64 = arith.divf %61, %63 : vector<16x1xf32>
    %65 = math.absf %64 : vector<16x1xf32>
    %cst_21 = arith.constant 1.200000e+01 : f32
    %66 = vector.broadcast %cst_21 : f32 to vector<16x1xf32>
    %67 = arith.mulf %65, %66 : vector<16x1xf32>
    %68 = arith.fptosi %67 : vector<16x1xf32> to vector<16x1xi32>
    %c12_i32 = arith.constant 12 : i32
    %69 = vector.broadcast %c12_i32 : i32 to vector<16x1xi32>
    %70 = arith.minsi %68, %69 : vector<16x1xi32>
    %71 = tpu.iota {dimensions = array<i32: 1>} : vector<1x16xi32>
    %72 = vector.broadcast %71 : vector<1x16xi32> to vector<16x16xi32>
    %73 = vector.broadcast %70 : vector<16x1xi32> to vector<16x16xi32>
    %74 = arith.cmpi eq, %72, %73 : vector<16x16xi32>
    %c0_22 = arith.constant 0 : index
    %c0_23 = arith.constant 0 : index
    %75 = vector.load %arg4[%c0_22, %c0_23] : memref<1x16xf32, #tpu.memory_space<vmem>>, vector<1x16xf32>
    %cst_24 = arith.constant 0.000000e+00 : f32
    %76 = vector.shape_cast %75 : vector<1x16xf32> to vector<1x16xf32>
    %77 = vector.broadcast %76 : vector<1x16xf32> to vector<16x16xf32>
    %78 = vector.broadcast %cst_24 : f32 to vector<16x16xf32>
    %79 = arith.select %74, %77, %78 : vector<16x16xi1>, vector<16x16xf32>
    %cst_25 = arith.constant dense<0.000000e+00> : vector<16xf32>
    %80 = vector.multi_reduction <add>, %79, %cst_25 [1] : vector<16x16xf32> to vector<16xf32>
    %81 = vector.shape_cast %80 : vector<16xf32> to vector<16x1xf32>
    %82 = arith.maximumf %47, %50 : vector<16x1xf32>
    %83 = arith.subf %47, %50 : vector<16x1xf32>
    %84 = arith.mulf %83, %83 : vector<16x1xf32>
    %cst_26 = arith.constant 2.200000e+02 : f32
    %85 = vector.broadcast %cst_26 : f32 to vector<16x1xf32>
    %86 = arith.subf %85, %82 : vector<16x1xf32>
    %87 = arith.mulf %86, %86 : vector<16x1xf32>
    %88 = arith.addf %84, %87 : vector<16x1xf32>
    %cst_27 = arith.constant 0.000000e+00 : f32
    %89 = vector.broadcast %cst_27 : f32 to vector<16x1xf32>
    %90 = arith.subf %89, %88 : vector<16x1xf32>
    %cst_28 = arith.constant 9.99999974E-5 : f32
    %91 = vector.broadcast %cst_28 : f32 to vector<16x1xf32>
    %92 = arith.mulf %90, %91 : vector<16x1xf32>
    %93 = math.exp %92 : vector<16x1xf32>
    %94 = arith.mulf %81, %93 : vector<16x1xf32>
    %cst_29 = arith.constant 0.000000e+00 : f32
    %95 = vector.broadcast %cst_29 : f32 to vector<16x1xf32>
    %96 = arith.select %55, %94, %95 : vector<16x1xi1>, vector<16x1xf32>
    %c0_30 = arith.constant 0 : index
    %c0_31 = arith.constant 0 : index
    %97 = vector.load %arg5[%c0_30, %c0_31] : memref<16x1xf32, #tpu.memory_space<vmem>>, vector<16x1xf32>
    tpu.vector_store %arg5[%c0_30, %c0_31], %96 {strides = array<i32>} : memref<16x1xf32, #tpu.memory_space<vmem>>, vector<16x1xf32>,
    return
  }
  func.func @transform_0(%arg0: i32) -> (i32, i32) {
    %c0_i32 = arith.constant 0 : i32
    %c0_i32_0 = arith.constant 0 : i32
    return %arg0, %c0_i32 : i32, i32
  }
  func.func @transform_1(%arg0: i32) -> (i32, i32) {
    %c0_i32 = arith.constant 0 : i32
    %c0_i32_0 = arith.constant 0 : i32
    %c0_i32_1 = arith.constant 0 : i32
    return %c0_i32, %c0_i32_0 : i32, i32
  }
  func.func @transform_2(%arg0: i32) -> (i32, i32) {
    %c0_i32 = arith.constant 0 : i32
    %c0_i32_0 = arith.constant 0 : i32
    %c0_i32_1 = arith.constant 0 : i32
    return %c0_i32, %c0_i32_0 : i32, i32
  }
  func.func @transform_3(%arg0: i32) -> (i32, i32) {
    %c0_i32 = arith.constant 0 : i32
    %c0_i32_0 = arith.constant 0 : i32
    %c0_i32_1 = arith.constant 0 : i32
    return %c0_i32, %c0_i32_0 : i32, i32
  }
  func.func @transform_4(%arg0: i32) -> (i32, i32) {
    %c0_i32 = arith.constant 0 : i32
    %c0_i32_0 = arith.constant 0 : i32
    return %arg0, %c0_i32 : i32, i32
  }
}

</mosaic_0001>

<llo_original>
// kernel: tpu_custom_call.1
$region0: #{tpu_custom_call.1}
  #allocation0 [shape = 'u32[]', space=smem, size = 0x4, offset = 0x4, fixed_abs, tag = 'smem constant byte address 0x4 - core index']
  #allocation1 [shape = 'u32[72,128]{1,0:T(1,128)}', space=vmem, size = 0x9000, scoped, tag = 'internal scratch']
  #allocation2 [shape = 'bf16[16,512]{1,0:T(8,128)(2,1)}', space=vmem, size = 0x4000, scoped, tag = 'scratch operand']
  %s0 = inlined_call_operand.hbm [shape: f32[16,441], index: 0, kind: input, shape index: {}]
  %s1 = inlined_call_operand.hbm [shape: bf16[512,512], index: 1, kind: input, shape index: {}]
  %s2 = inlined_call_operand.hbm [shape: s32[1,512], index: 2, kind: input, shape index: {}]
  %s3 = inlined_call_operand.vmem [shape: f32[1,16], index: 3, kind: input, shape index: {}]
  %s4 = inlined_call_operand.vmem [shape: f32[16,1], index: 4, kind: output, shape index: {}]
  %s5 = sld [smem:[#allocation0]]
  $region38: #{tpu_custom_call.1} parent=0
    _
  %s7 = ssub.s32 1, %s5
  %s8 = scalar_select 0, %s7, %s5
  $region1: #{tpu_custom_call.1} parent=0
    #allocation3 [shape = 'u8[32768]{0}', space=vmem, size = 0x8000, scoped, tag = 'input window, operand 0, single buffered']
    #allocation4 [shape = 's32[1]{0}', space=sflag, size = 0x4, scoped, tag = 'scoped memory for tpu_custom_call.1']
    #allocation5 [shape = 'u8[524288]{0}', space=vmem, size = 0x80000, scoped, tag = 'input window, operand 1, single buffered']
    #allocation6 [shape = 's32[1]{0}', space=sflag, size = 0x4, scoped, tag = 'scoped memory for tpu_custom_call.1']
    #allocation7 [shape = 'u8[2048]{0}', space=vmem, size = 0x800, scoped, tag = 'input window, operand 2, single buffered']
    %9 = vsyncpa [#allocation4], 0
    %10 = vsyncpa [#allocation6], 0
    // Predicated region
    $region2: #{tpu_custom_call.1} parent=1 // pred_check
      _
    $region3: #{tpu_custom_call.1} parent=1 // pred_check_branch
      %12 = sbr.rel (0) target = $region5
    $region4: #{tpu_custom_call.1} parent=1 // pred_region
      %14 = vsyncadd [#allocation4], 0
      %s15 = sshll.u32 %s0, 4
      %s16 = int_to_ptr.hbm [resolvable:$true] %s15
      %s17 = sshll.u32 [#allocation3], 4
      %s18 = int_to_ptr.vmem [resolvable:$true] %s17
      %23 = dma.hbm_to_vmem [thread:$0]  %s16, 1024, %s18, [#allocation4], 512, 512, 32
    $region5: #{tpu_custom_call.1} parent=1 // pred_fallthru
      _
    // Predicated region
    $region6: #{tpu_custom_call.1} parent=1 // pred_check
      _
    $region7: #{tpu_custom_call.1} parent=1 // pred_check_branch
      %25 = sbr.rel (0) target = $region9
    $region8: #{tpu_custom_call.1} parent=1 // pred_region
      %27 = vsyncadd [#allocation6], 0
      %s28 = sshll.u32 %s1, 4
      %s29 = int_to_ptr.hbm [resolvable:$true] %s28
      %s30 = sshll.u32 [#allocation5], 4
      %s31 = int_to_ptr.vmem [resolvable:$true] %s30
      %36 = dma.hbm_to_vmem [thread:$0]  %s29, 16384, %s31, [#allocation6], 256, 256, 16
    $region9: #{tpu_custom_call.1} parent=1 // pred_fallthru
      _
    // Predicated region
    $region10: #{tpu_custom_call.1} parent=1 // pred_check
      _
    $region11: #{tpu_custom_call.1} parent=1 // pred_check_branch
      %38 = sbr.rel (0) target = $region13
    $region12: #{tpu_custom_call.1} parent=1 // pred_region
      %40 = vsyncadd [#allocation6], 0
      %s42 = sshll.u32 %s2, 4
      %s43 = int_to_ptr.hbm [resolvable:$true] %s42
      %s44 = sshll.u32 [#allocation7], 4
      %s45 = int_to_ptr.vmem [resolvable:$true] %s44
      %47 = dma.hbm_to_vmem [thread:$0]  %s43, 64, %s45, [#allocation6]
    $region13: #{tpu_custom_call.1} parent=1 // pred_fallthru
      _
    // Predicated region
    $region14: #{tpu_custom_call.1} parent=1 // pred_check
      _
    $region15: #{tpu_custom_call.1} parent=1 // pred_check_branch
      %49 = sbr.rel (0) target = $region17
    $region16: #{tpu_custom_call.1} parent=1 // pred_region
      _
    $region17: #{tpu_custom_call.1} parent=1 // pred_fallthru
      _
    // Predicated region
    $region18: #{tpu_custom_call.1} parent=1 // pred_check
      _
    $region19: #{tpu_custom_call.1} parent=1 // pred_check_branch
      %51 = sbr.rel (0) target = $region21
    $region20: #{tpu_custom_call.1} parent=1 // pred_region
      %53 = dma.done [#allocation4], 1024
    $region21: #{tpu_custom_call.1} parent=1 // pred_fallthru
      _
    // Predicated region
    $region22: #{tpu_custom_call.1} parent=1 // pred_check
      _
    $region23: #{tpu_custom_call.1} parent=1 // pred_check_branch
      %55 = sbr.rel (0) target = $region25
    $region24: #{tpu_custom_call.1} parent=1 // pred_region
      %57 = dma.done [#allocation6], 16384
    $region25: #{tpu_custom_call.1} parent=1 // pred_fallthru
      _
    // Predicated region
    $region26: #{tpu_custom_call.1} parent=1 // pred_check
      _
    $region27: #{tpu_custom_call.1} parent=1 // pred_check_branch
      %59 = sbr.rel (0) target = $region29
    $region28: #{tpu_custom_call.1} parent=1 // pred_region
      %61 = dma.done [#allocation6], 64
    $region29: #{tpu_custom_call.1} parent=1 // pred_fallthru
      _
    %v63 = vld [vmem:[#allocation3] sm:$0xff]
    %v64 = vld [vmem:[#allocation3 + $0x8] sm:$0xff]
    %v65 = vld [vmem:[#allocation3 + $0x10] sm:$0xff]
    %v66 = vld [vmem:[#allocation3 + $0x18] sm:$0xff]
    %v67 = vld [vmem:[#allocation3 + $0x20] sm:$0xff]
    %v68 = vld [vmem:[#allocation3 + $0x28] sm:$0xff]
    %v69 = vld [vmem:[#allocation3 + $0x30] sm:$0xff]
    %v70 = vld [vmem:[#allocation3 + $0x38] sm:$0xff]
    %v71 = vpack.c.bf16 %v64, %v63
    %v72 = vpack.c.bf16 %v66, %v65
    %v73 = vpack.c.bf16 %v68, %v67
    %v74 = vpack.c.bf16 %v70, %v69
    %75 = vst [vmem:[#allocation2] sm:$0xff] %v71
    %vm76 = vcmask 1043456
    %vm77 = vcmask 465924
    %vm78 = vmor %vm77, %vm76
    %79 = vst.msk [vmem:[#allocation2 + $0x8] sm:$0xff] %vm78, %v72
    %80 = vst [vmem:[#allocation2 + $0x10] sm:$0xff] %v73
    %81 = vst.msk [vmem:[#allocation2 + $0x18] sm:$0xff] %vm78, %v74
    %vm82 = vcmask 1043912
    %83 = vst.msk [vmem:[#allocation2 + $0xc] sm:$0xf] %vm82, 0
    %84 = vst.msk [vmem:[#allocation2 + $0x1c] sm:$0xf] %vm82, 0
    %v85 = vld [vmem:[#allocation2] sm:$0xff]
    %v86 = vld [vmem:[#allocation2 + $0x8] sm:$0xff]
    %v87 = vld [vmem:[#allocation2 + $0x10] sm:$0xff]
    %v88 = vld [vmem:[#allocation2 + $0x18] sm:$0xff]
    %v89 = vld [vmem:[#allocation5] sm:$0xff]
    %v90 = vld [vmem:[#allocation5 + $0x8] sm:$0xff]
    %v91 = vld [vmem:[#allocation5 + $0x10] sm:$0xff]
    %v92 = vld [vmem:[#allocation5 + $0x18] sm:$0xff]
    %v93 = vld [vmem:[#allocation5 + $0x20] sm:$0xff]
    %v94 = vld [vmem:[#allocation5 + $0x28] sm:$0xff]
    %v95 = vld [vmem:[#allocation5 + $0x30] sm:$0xff]
    %v96 = vld [vmem:[#allocation5 + $0x38] sm:$0xff]
    %v97 = vld [vmem:[#allocation5 + $0x40] sm:$0xff]
    %v98 = vld [vmem:[#allocation5 + $0x48] sm:$0xff]
    %v99 = vld [vmem:[#allocation5 + $0x50] sm:$0xff]
    %v100 = vld [vmem:[#allocation5 + $0x58] sm:$0xff]
    %v101 = vld [vmem:[#allocation5 + $0x60] sm:$0xff]
    %v102 = vld [vmem:[#allocation5 + $0x68] sm:$0xff]
    %v103 = vld [vmem:[#allocation5 + $0x70] sm:$0xff]
    %v104 = vld [vmem:[#allocation5 + $0x78] sm:$0xff]
    %v105 = vld [vmem:[#allocation5 + $0x80] sm:$0xff]
    %v106 = vld [vmem:[#allocation5 + $0x88] sm:$0xff]
    %v107 = vld [vmem:[#allocation5 + $0x90] sm:$0xff]
    %v108 = vld [vmem:[#allocation5 + $0x98] sm:$0xff]
    %v109 = vld [vmem:[#allocation5 + $0xa0] sm:$0xff]
    %v110 = vld [vmem:[#allocation5 + $0xa8] sm:$0xff]
    %v111 = vld [vmem:[#allocation5 + $0xb0] sm:$0xff]
    %v112 = vld [vmem:[#allocation5 + $0xb8] sm:$0xff]
    %v113 = vld [vmem:[#allocation5 + $0xc0] sm:$0xff]
    %v114 = vld [vmem:[#allocation5 + $0xc8] sm:$0xff]
    %v115 = vld [vmem:[#allocation5 + $0xd0] sm:$0xff]
    %v116 = vld [vmem:[#allocation5 + $0xd8] sm:$0xff]
    %v117 = vld [vmem:[#allocation5 + $0xe0] sm:$0xff]
    %v118 = vld [vmem:[#allocation5 + $0xe8] sm:$0xff]
    %v119 = vld [vmem:[#allocation5 + $0xf0] sm:$0xff]
    %v120 = vld [vmem:[#allocation5 + $0xf8] sm:$0xff]
    %v121 = vld [vmem:[#allocation5 + $0x100] sm:$0xff]
    %v122 = vld [vmem:[#allocation5 + $0x108] sm:$0xff]
    %v123 = vld [vmem:[#allocation5 + $0x110] sm:$0xff]
    %v124 = vld [vmem:[#allocation5 + $0x118] sm:$0xff]
    %v125 = vld [vmem:[#allocation5 + $0x120] sm:$0xff]
    %v126 = vld [vmem:[#allocation5 + $0x128] sm:$0xff]
    %v127 = vld [vmem:[#allocation5 + $0x130] sm:$0xff]
    %v128 = vld [vmem:[#allocation5 + $0x138] sm:$0xff]
    %v129 = vld [vmem:[#allocation5 + $0x140] sm:$0xff]
    %v130 = vld [vmem:[#allocation5 + $0x148] sm:$0xff]
    %v131 = vld [vmem:[#allocation5 + $0x150] sm:$0xff]
    %v132 = vld [vmem:[#allocation5 + $0x158] sm:$0xff]
    %v133 = vld [vmem:[#allocation5 + $0x160] sm:$0xff]
    %v134 = vld [vmem:[#allocation5 + $0x168] sm:$0xff]
    %v135 = vld [vmem:[#allocation5 + $0x170] sm:$0xff]
    %v136 = vld [vmem:[#allocation5 + $0x178] sm:$0xff]
    %v137 = vld [vmem:[#allocation5 + $0x180] sm:$0xff]
    %v138 = vld [vmem:[#allocation5 + $0x188] sm:$0xff]
    %v139 = vld [vmem:[#allocation5 + $0x190] sm:$0xff]
    %v140 = vld [vmem:[#allocation5 + $0x198] sm:$0xff]
    %v141 = vld [vmem:[#allocation5 + $0x1a0] sm:$0xff]
    %v142 = vld [vmem:[#allocation5 + $0x1a8] sm:$0xff]
    %v143 = vld [vmem:[#allocation5 + $0x1b0] sm:$0xff]
    %v144 = vld [vmem:[#allocation5 + $0x1b8] sm:$0xff]
    %v145 = vld [vmem:[#allocation5 + $0x1c0] sm:$0xff]
    %v146 = vld [vmem:[#allocation5 + $0x1c8] sm:$0xff]
    %v147 = vld [vmem:[#allocation5 + $0x1d0] sm:$0xff]
    %v148 = vld [vmem:[#allocation5 + $0x1d8] sm:$0xff]
    %v149 = vld [vmem:[#allocation5 + $0x1e0] sm:$0xff]
    %v150 = vld [vmem:[#allocation5 + $0x1e8] sm:$0xff]
    %v151 = vld [vmem:[#allocation5 + $0x1f0] sm:$0xff]
    %v152 = vld [vmem:[#allocation5 + $0x1f8] sm:$0xff]
    %v153 = vld [vmem:[#allocation5 + $0x200] sm:$0xff]
    %v154 = vld [vmem:[#allocation5 + $0x208] sm:$0xff]
    %v155 = vld [vmem:[#allocation5 + $0x210] sm:$0xff]
    %v156 = vld [vmem:[#allocation5 + $0x218] sm:$0xff]
    %v157 = vld [vmem:[#allocation5 + $0x220] sm:$0xff]
    %v158 = vld [vmem:[#allocation5 + $0x228] sm:$0xff]
    %v159 = vld [vmem:[#allocation5 + $0x230] sm:$0xff]
    %v160 = vld [vmem:[#allocation5 + $0x238] sm:$0xff]
    %v161 = vld [vmem:[#allocation5 + $0x240] sm:$0xff]
    %v162 = vld [vmem:[#allocation5 + $0x248] sm:$0xff]
    %v163 = vld [vmem:[#allocation5 + $0x250] sm:$0xff]
    %v164 = vld [vmem:[#allocation5 + $0x258] sm:$0xff]
    %v165 = vld [vmem:[#allocation5 + $0x260] sm:$0xff]
    %v166 = vld [vmem:[#allocation5 + $0x268] sm:$0xff]
    %v167 = vld [vmem:[#allocation5 + $0x270] sm:$0xff]
    %v168 = vld [vmem:[#allocation5 + $0x278] sm:$0xff]
    %v169 = vld [vmem:[#allocation5 + $0x280] sm:$0xff]
    %v170 = vld [vmem:[#allocation5 + $0x288] sm:$0xff]
    %v171 = vld [vmem:[#allocation5 + $0x290] sm:$0xff]
    %v172 = vld [vmem:[#allocation5 + $0x298] sm:$0xff]
    %v173 = vld [vmem:[#allocation5 + $0x2a0] sm:$0xff]
    %v174 = vld [vmem:[#allocation5 + $0x2a8] sm:$0xff]
    %v175 = vld [vmem:[#allocation5 + $0x2b0] sm:$0xff]
    %v176 = vld [vmem:[#allocation5 + $0x2b8] sm:$0xff]
    %v177 = vld [vmem:[#allocation5 + $0x2c0] sm:$0xff]
    %v178 = vld [vmem:[#allocation5 + $0x2c8] sm:$0xff]
    %v179 = vld [vmem:[#allocation5 + $0x2d0] sm:$0xff]
    %v180 = vld [vmem:[#allocation5 + $0x2d8] sm:$0xff]
    %v181 = vld [vmem:[#allocation5 + $0x2e0] sm:$0xff]
    %v182 = vld [vmem:[#allocation5 + $0x2e8] sm:$0xff]
    %v183 = vld [vmem:[#allocation5 + $0x2f0] sm:$0xff]
    %v184 = vld [vmem:[#allocation5 + $0x2f8] sm:$0xff]
    %v185 = vld [vmem:[#allocation5 + $0x300] sm:$0xff]
    %v186 = vld [vmem:[#allocation5 + $0x308] sm:$0xff]
    %v187 = vld [vmem:[#allocation5 + $0x310] sm:$0xff]
    %v188 = vld [vmem:[#allocation5 + $0x318] sm:$0xff]
    %v189 = vld [vmem:[#allocation5 + $0x320] sm:$0xff]
    %v190 = vld [vmem:[#allocation5 + $0x328] sm:$0xff]
    %v191 = vld [vmem:[#allocation5 + $0x330] sm:$0xff]
    %v192 = vld [vmem:[#allocation5 + $0x338] sm:$0xff]
    %v193 = vld [vmem:[#allocation5 + $0x340] sm:$0xff]
    %v194 = vld [vmem:[#allocation5 + $0x348] sm:$0xff]
    %v195 = vld [vmem:[#allocation5 + $0x350] sm:$0xff]
    %v196 = vld [vmem:[#allocation5 + $0x358] sm:$0xff]
    %v197 = vld [vmem:[#allocation5 + $0x360] sm:$0xff]
    %v198 = vld [vmem:[#allocation5 + $0x368] sm:$0xff]
    %v199 = vld [vmem:[#allocation5 + $0x370] sm:$0xff]
    %v200 = vld [vmem:[#allocation5 + $0x378] sm:$0xff]
    %v201 = vld [vmem:[#allocation5 + $0x380] sm:$0xff]
    %v202 = vld [vmem:[#allocation5 + $0x388] sm:$0xff]
    %v203 = vld [vmem:[#allocation5 + $0x390] sm:$0xff]
    %v204 = vld [vmem:[#allocation5 + $0x398] sm:$0xff]
    %v205 = vld [vmem:[#allocation5 + $0x3a0] sm:$0xff]
    %v206 = vld [vmem:[#allocation5 + $0x3a8] sm:$0xff]
    %v207 = vld [vmem:[#allocation5 + $0x3b0] sm:$0xff]
    %v208 = vld [vmem:[#allocation5 + $0x3b8] sm:$0xff]
    %v209 = vld [vmem:[#allocation5 + $0x3c0] sm:$0xff]
    %v210 = vld [vmem:[#allocation5 + $0x3c8] sm:$0xff]
    %v211 = vld [vmem:[#allocation5 + $0x3d0] sm:$0xff]
    %v212 = vld [vmem:[#allocation5 + $0x3d8] sm:$0xff]
    %v213 = vld [vmem:[#allocation5 + $0x3e0] sm:$0xff]
    %v214 = vld [vmem:[#allocation5 + $0x3e8] sm:$0xff]
    %v215 = vld [vmem:[#allocation5 + $0x3f0] sm:$0xff]
    %v216 = vld [vmem:[#allocation5 + $0x3f8] sm:$0xff]
    %v221 = vunpack.c.l.b16 %v85
    %v222 = vunpack.c.h.b16 %v85
    %v223 = vunpack.c.l.b16 %v86
    %v224 = vunpack.c.h.b16 %v86
    %v225 = vunpack.c.l.b16 %v87
    %v226 = vunpack.c.h.b16 %v87
    %v227 = vunpack.c.l.b16 %v88
    %v228 = vunpack.c.h.b16 %v88
    %v229 = vpack.c.b16 %v225, %v221
    %v230 = vpack.c.b16 %v226, %v222
    %v231 = vpack.c.b16 %v227, %v223
    %v232 = vpack.c.b16 %v228, %v224
    %v365 = vunpack.c.l.b16 %v89
    %v366 = vunpack.c.h.b16 %v89
    %v367 = vunpack.c.l.b16 %v90
    %v368 = vunpack.c.h.b16 %v90
    %v369 = vunpack.c.l.b16 %v91
    %v370 = vunpack.c.h.b16 %v91
    %v371 = vunpack.c.l.b16 %v92
    %v372 = vunpack.c.h.b16 %v92
    %v373 = vunpack.c.l.b16 %v93
    %v374 = vunpack.c.h.b16 %v93
    %v375 = vunpack.c.l.b16 %v94
    %v376 = vunpack.c.h.b16 %v94
    %v377 = vunpack.c.l.b16 %v95
    %v378 = vunpack.c.h.b16 %v95
    %v379 = vunpack.c.l.b16 %v96
    %v380 = vunpack.c.h.b16 %v96
    %v381 = vunpack.c.l.b16 %v97
    %v382 = vunpack.c.h.b16 %v97
    %v383 = vunpack.c.l.b16 %v98
    %v384 = vunpack.c.h.b16 %v98
    %v385 = vunpack.c.l.b16 %v99
    %v386 = vunpack.c.h.b16 %v99
    %v387 = vunpack.c.l.b16 %v100
    %v388 = vunpack.c.h.b16 %v100
    %v389 = vunpack.c.l.b16 %v101
    %v390 = vunpack.c.h.b16 %v101
    %v391 = vunpack.c.l.b16 %v102
    %v392 = vunpack.c.h.b16 %v102
    %v393 = vunpack.c.l.b16 %v103
    %v394 = vunpack.c.h.b16 %v103
    %v395 = vunpack.c.l.b16 %v104
    %v396 = vunpack.c.h.b16 %v104
    %v397 = vunpack.c.l.b16 %v105
    %v398 = vunpack.c.h.b16 %v105
    %v399 = vunpack.c.l.b16 %v106
    %v400 = vunpack.c.h.b16 %v106
    %v401 = vunpack.c.l.b16 %v107
    %v402 = vunpack.c.h.b16 %v107
    %v403 = vunpack.c.l.b16 %v108
    %v404 = vunpack.c.h.b16 %v108
    %v405 = vunpack.c.l.b16 %v109
    %v406 = vunpack.c.h.b16 %v109
    %v407 = vunpack.c.l.b16 %v110
    %v408 = vunpack.c.h.b16 %v110
    %v409 = vunpack.c.l.b16 %v111
    %v410 = vunpack.c.h.b16 %v111
    %v411 = vunpack.c.l.b16 %v112
    %v412 = vunpack.c.h.b16 %v112
    %v413 = vunpack.c.l.b16 %v113
    %v414 = vunpack.c.h.b16 %v113
    %v415 = vunpack.c.l.b16 %v114
    %v416 = vunpack.c.h.b16 %v114
    %v417 = vunpack.c.l.b16 %v115
    %v418 = vunpack.c.h.b16 %v115
    %v419 = vunpack.c.l.b16 %v116
    %v420 = vunpack.c.h.b16 %v116
    %v421 = vunpack.c.l.b16 %v117
    %v422 = vunpack.c.h.b16 %v117
    %v423 = vunpack.c.l.b16 %v118
    %v424 = vunpack.c.h.b16 %v118
    %v425 = vunpack.c.l.b16 %v119
    %v426 = vunpack.c.h.b16 %v119
    %v427 = vunpack.c.l.b16 %v120
    %v428 = vunpack.c.h.b16 %v120
    %v429 = vunpack.c.l.b16 %v121
    %v430 = vunpack.c.h.b16 %v121
    %v431 = vunpack.c.l.b16 %v122
    %v432 = vunpack.c.h.b16 %v122
    %v433 = vunpack.c.l.b16 %v123
    %v434 = vunpack.c.h.b16 %v123
    %v435 = vunpack.c.l.b16 %v124
    %v436 = vunpack.c.h.b16 %v124
    %v437 = vunpack.c.l.b16 %v125
    %v438 = vunpack.c.h.b16 %v125
    %v439 = vunpack.c.l.b16 %v126
    %v440 = vunpack.c.h.b16 %v126
    %v441 = vunpack.c.l.b16 %v127
    %v442 = vunpack.c.h.b16 %v127
    %v443 = vunpack.c.l.b16 %v128
    %v444 = vunpack.c.h.b16 %v128
    %v445 = vunpack.c.l.b16 %v129
    %v446 = vunpack.c.h.b16 %v129
    %v447 = vunpack.c.l.b16 %v130
    %v448 = vunpack.c.h.b16 %v130
    %v449 = vunpack.c.l.b16 %v131
    %v450 = vunpack.c.h.b16 %v131
    %v451 = vunpack.c.l.b16 %v132
    %v452 = vunpack.c.h.b16 %v132
    %v453 = vunpack.c.l.b16 %v133
    %v454 = vunpack.c.h.b16 %v133
    %v455 = vunpack.c.l.b16 %v134
    %v456 = vunpack.c.h.b16 %v134
    %v457 = vunpack.c.l.b16 %v135
    %v458 = vunpack.c.h.b16 %v135
    %v459 = vunpack.c.l.b16 %v136
    %v460 = vunpack.c.h.b16 %v136
    %v461 = vunpack.c.l.b16 %v137
    %v462 = vunpack.c.h.b16 %v137
    %v463 = vunpack.c.l.b16 %v138
    %v464 = vunpack.c.h.b16 %v138
    %v465 = vunpack.c.l.b16 %v139
    %v466 = vunpack.c.h.b16 %v139
    %v467 = vunpack.c.l.b16 %v140
    %v468 = vunpack.c.h.b16 %v140
    %v469 = vunpack.c.l.b16 %v141
    %v470 = vunpack.c.h.b16 %v141
    %v471 = vunpack.c.l.b16 %v142
    %v472 = vunpack.c.h.b16 %v142
    %v473 = vunpack.c.l.b16 %v143
    %v474 = vunpack.c.h.b16 %v143
    %v475 = vunpack.c.l.b16 %v144
    %v476 = vunpack.c.h.b16 %v144
    %v477 = vunpack.c.l.b16 %v145
    %v478 = vunpack.c.h.b16 %v145
    %v479 = vunpack.c.l.b16 %v146
    %v480 = vunpack.c.h.b16 %v146
    %v481 = vunpack.c.l.b16 %v147
    %v482 = vunpack.c.h.b16 %v147
    %v483 = vunpack.c.l.b16 %v148
    %v484 = vunpack.c.h.b16 %v148
    %v485 = vunpack.c.l.b16 %v149
    %v486 = vunpack.c.h.b16 %v149
    %v487 = vunpack.c.l.b16 %v150
    %v488 = vunpack.c.h.b16 %v150
    %v489 = vunpack.c.l.b16 %v151
    %v490 = vunpack.c.h.b16 %v151
    %v491 = vunpack.c.l.b16 %v152
    %v492 = vunpack.c.h.b16 %v152
    %v493 = vunpack.c.l.b16 %v153
    %v494 = vunpack.c.h.b16 %v153
    %v495 = vunpack.c.l.b16 %v154
    %v496 = vunpack.c.h.b16 %v154
    %v497 = vunpack.c.l.b16 %v155
    %v498 = vunpack.c.h.b16 %v155
    %v499 = vunpack.c.l.b16 %v156
    %v500 = vunpack.c.h.b16 %v156
    %v501 = vunpack.c.l.b16 %v157
    %v502 = vunpack.c.h.b16 %v157
    %v503 = vunpack.c.l.b16 %v158
    %v504 = vunpack.c.h.b16 %v158
    %v505 = vunpack.c.l.b16 %v159
    %v506 = vunpack.c.h.b16 %v159
    %v507 = vunpack.c.l.b16 %v160
    %v508 = vunpack.c.h.b16 %v160
    %v509 = vunpack.c.l.b16 %v161
    %v510 = vunpack.c.h.b16 %v161
    %v511 = vunpack.c.l.b16 %v162
    %v512 = vunpack.c.h.b16 %v162
    %v513 = vunpack.c.l.b16 %v163
    %v514 = vunpack.c.h.b16 %v163
    %v515 = vunpack.c.l.b16 %v164
    %v516 = vunpack.c.h.b16 %v164
    %v517 = vunpack.c.l.b16 %v165
    %v518 = vunpack.c.h.b16 %v165
    %v519 = vunpack.c.l.b16 %v166
    %v520 = vunpack.c.h.b16 %v166
    %v521 = vunpack.c.l.b16 %v167
    %v522 = vunpack.c.h.b16 %v167
    %v523 = vunpack.c.l.b16 %v168
    %v524 = vunpack.c.h.b16 %v168
    %v525 = vunpack.c.l.b16 %v169
    %v526 = vunpack.c.h.b16 %v169
    %v527 = vunpack.c.l.b16 %v170
    %v528 = vunpack.c.h.b16 %v170
    %v529 = vunpack.c.l.b16 %v171
    %v530 = vunpack.c.h.b16 %v171
    %v531 = vunpack.c.l.b16 %v172
    %v532 = vunpack.c.h.b16 %v172
    %v533 = vunpack.c.l.b16 %v173
    %v534 = vunpack.c.h.b16 %v173
    %v535 = vunpack.c.l.b16 %v174
    %v536 = vunpack.c.h.b16 %v174
    %v537 = vunpack.c.l.b16 %v175
    %v538 = vunpack.c.h.b16 %v175
    %v539 = vunpack.c.l.b16 %v176
    %v540 = vunpack.c.h.b16 %v176
    %v541 = vunpack.c.l.b16 %v177
    %v542 = vunpack.c.h.b16 %v177
    %v543 = vunpack.c.l.b16 %v178
    %v544 = vunpack.c.h.b16 %v178
    %v545 = vunpack.c.l.b16 %v179
    %v546 = vunpack.c.h.b16 %v179
    %v547 = vunpack.c.l.b16 %v180
    %v548 = vunpack.c.h.b16 %v180
    %v549 = vunpack.c.l.b16 %v181
    %v550 = vunpack.c.h.b16 %v181
    %v551 = vunpack.c.l.b16 %v182
    %v552 = vunpack.c.h.b16 %v182
    %v553 = vunpack.c.l.b16 %v183
    %v554 = vunpack.c.h.b16 %v183
    %v555 = vunpack.c.l.b16 %v184
    %v556 = vunpack.c.h.b16 %v184
    %v557 = vunpack.c.l.b16 %v185
    %v558 = vunpack.c.h.b16 %v185
    %v559 = vunpack.c.l.b16 %v186
    %v560 = vunpack.c.h.b16 %v186
    %v561 = vunpack.c.l.b16 %v187
    %v562 = vunpack.c.h.b16 %v187
    %v563 = vunpack.c.l.b16 %v188
    %v564 = vunpack.c.h.b16 %v188
    %v565 = vunpack.c.l.b16 %v189
    %v566 = vunpack.c.h.b16 %v189
    %v567 = vunpack.c.l.b16 %v190
    %v568 = vunpack.c.h.b16 %v190
    %v569 = vunpack.c.l.b16 %v191
    %v570 = vunpack.c.h.b16 %v191
    %v571 = vunpack.c.l.b16 %v192
    %v572 = vunpack.c.h.b16 %v192
    %v573 = vunpack.c.l.b16 %v193
    %v574 = vunpack.c.h.b16 %v193
    %v575 = vunpack.c.l.b16 %v194
    %v576 = vunpack.c.h.b16 %v194
    %v577 = vunpack.c.l.b16 %v195
    %v578 = vunpack.c.h.b16 %v195
    %v579 = vunpack.c.l.b16 %v196
    %v580 = vunpack.c.h.b16 %v196
    %v581 = vunpack.c.l.b16 %v197
    %v582 = vunpack.c.h.b16 %v197
    %v583 = vunpack.c.l.b16 %v198
    %v584 = vunpack.c.h.b16 %v198
    %v585 = vunpack.c.l.b16 %v199
    %v586 = vunpack.c.h.b16 %v199
    %v587 = vunpack.c.l.b16 %v200
    %v588 = vunpack.c.h.b16 %v200
    %v589 = vunpack.c.l.b16 %v201
    %v590 = vunpack.c.h.b16 %v201
    %v591 = vunpack.c.l.b16 %v202
    %v592 = vunpack.c.h.b16 %v202
    %v593 = vunpack.c.l.b16 %v203
    %v594 = vunpack.c.h.b16 %v203
    %v595 = vunpack.c.l.b16 %v204
    %v596 = vunpack.c.h.b16 %v204
    %v597 = vunpack.c.l.b16 %v205
    %v598 = vunpack.c.h.b16 %v205
    %v599 = vunpack.c.l.b16 %v206
    %v600 = vunpack.c.h.b16 %v206
    %v601 = vunpack.c.l.b16 %v207
    %v602 = vunpack.c.h.b16 %v207
    %v603 = vunpack.c.l.b16 %v208
    %v604 = vunpack.c.h.b16 %v208
    %v605 = vunpack.c.l.b16 %v209
    %v606 = vunpack.c.h.b16 %v209
    %v607 = vunpack.c.l.b16 %v210
    %v608 = vunpack.c.h.b16 %v210
    %v609 = vunpack.c.l.b16 %v211
    %v610 = vunpack.c.h.b16 %v211
    %v611 = vunpack.c.l.b16 %v212
    %v612 = vunpack.c.h.b16 %v212
    %v613 = vunpack.c.l.b16 %v213
    %v614 = vunpack.c.h.b16 %v213
    %v615 = vunpack.c.l.b16 %v214
    %v616 = vunpack.c.h.b16 %v214
    %v617 = vunpack.c.l.b16 %v215
    %v618 = vunpack.c.h.b16 %v215
    %v619 = vunpack.c.l.b16 %v216
    %v620 = vunpack.c.h.b16 %v216
    %v621 = vpack.c.b16 %v369, %v365
    %v622 = vpack.c.b16 %v370, %v366
    %v623 = vpack.c.b16 %v371, %v367
    %v624 = vpack.c.b16 %v372, %v368
    %v625 = vpack.c.b16 %v377, %v373
    %v626 = vpack.c.b16 %v378, %v374
    %v627 = vpack.c.b16 %v379, %v375
    %v628 = vpack.c.b16 %v380, %v376
    %v629 = vpack.c.b16 %v385, %v381
    %v630 = vpack.c.b16 %v386, %v382
    %v631 = vpack.c.b16 %v387, %v383
    %v632 = vpack.c.b16 %v388, %v384
    %v633 = vpack.c.b16 %v393, %v389
    %v634 = vpack.c.b16 %v394, %v390
    %v635 = vpack.c.b16 %v395, %v391
    %v636 = vpack.c.b16 %v396, %v392
    %v637 = vpack.c.b16 %v401, %v397
    %v638 = vpack.c.b16 %v402, %v398
    %v639 = vpack.c.b16 %v403, %v399
    %v640 = vpack.c.b16 %v404, %v400
    %v641 = vpack.c.b16 %v409, %v405
    %v642 = vpack.c.b16 %v410, %v406
    %v643 = vpack.c.b16 %v411, %v407
    %v644 = vpack.c.b16 %v412, %v408
    %v645 = vpack.c.b16 %v417, %v413
    %v646 = vpack.c.b16 %v418, %v414
    %v647 = vpack.c.b16 %v419, %v415
    %v648 = vpack.c.b16 %v420, %v416
    %v649 = vpack.c.b16 %v425, %v421
    %v650 = vpack.c.b16 %v426, %v422
    %v651 = vpack.c.b16 %v427, %v423
    %v652 = vpack.c.b16 %v428, %v424
    %v653 = vpack.c.b16 %v433, %v429
    %v654 = vpack.c.b16 %v434, %v430
    %v655 = vpack.c.b16 %v435, %v431
    %v656 = vpack.c.b16 %v436, %v432
    %v657 = vpack.c.b16 %v441, %v437
    %v658 = vpack.c.b16 %v442, %v438
    %v659 = vpack.c.b16 %v443, %v439
    %v660 = vpack.c.b16 %v444, %v440
    %v661 = vpack.c.b16 %v449, %v445
    %v662 = vpack.c.b16 %v450, %v446
    %v663 = vpack.c.b16 %v451, %v447
    %v664 = vpack.c.b16 %v452, %v448
    %v665 = vpack.c.b16 %v457, %v453
    %v666 = vpack.c.b16 %v458, %v454
    %v667 = vpack.c.b16 %v459, %v455
    %v668 = vpack.c.b16 %v460, %v456
    %v669 = vpack.c.b16 %v465, %v461
    %v670 = vpack.c.b16 %v466, %v462
    %v671 = vpack.c.b16 %v467, %v463
    %v672 = vpack.c.b16 %v468, %v464
    %v673 = vpack.c.b16 %v473, %v469
    %v674 = vpack.c.b16 %v474, %v470
    %v675 = vpack.c.b16 %v475, %v471
    %v676 = vpack.c.b16 %v476, %v472
    %v677 = vpack.c.b16 %v481, %v477
    %v678 = vpack.c.b16 %v482, %v478
    %v679 = vpack.c.b16 %v483, %v479
    %v680 = vpack.c.b16 %v484, %v480
    %v681 = vpack.c.b16 %v489, %v485
    %v682 = vpack.c.b16 %v490, %v486
    %v683 = vpack.c.b16 %v491, %v487
    %v684 = vpack.c.b16 %v492, %v488
    %v685 = vpack.c.b16 %v497, %v493
    %v686 = vpack.c.b16 %v498, %v494
    %v687 = vpack.c.b16 %v499, %v495
    %v688 = vpack.c.b16 %v500, %v496
    %v689 = vpack.c.b16 %v505, %v501
    %v690 = vpack.c.b16 %v506, %v502
    %v691 = vpack.c.b16 %v507, %v503
    %v692 = vpack.c.b16 %v508, %v504
    %v693 = vpack.c.b16 %v513, %v509
    %v694 = vpack.c.b16 %v514, %v510
    %v695 = vpack.c.b16 %v515, %v511
    %v696 = vpack.c.b16 %v516, %v512
    %v697 = vpack.c.b16 %v521, %v517
    %v698 = vpack.c.b16 %v522, %v518
    %v699 = vpack.c.b16 %v523, %v519
    %v700 = vpack.c.b16 %v524, %v520
    %v701 = vpack.c.b16 %v529, %v525
    %v702 = vpack.c.b16 %v530, %v526
    %v703 = vpack.c.b16 %v531, %v527
    %v704 = vpack.c.b16 %v532, %v528
    %v705 = vpack.c.b16 %v537, %v533
    %v706 = vpack.c.b16 %v538, %v534
    %v707 = vpack.c.b16 %v539, %v535
    %v708 = vpack.c.b16 %v540, %v536
    %v709 = vpack.c.b16 %v545, %v541
    %v710 = vpack.c.b16 %v546, %v542
    %v711 = vpack.c.b16 %v547, %v543
    %v712 = vpack.c.b16 %v548, %v544
    %v713 = vpack.c.b16 %v553, %v549
    %v714 = vpack.c.b16 %v554, %v550
    %v715 = vpack.c.b16 %v555, %v551
    %v716 = vpack.c.b16 %v556, %v552
    %v717 = vpack.c.b16 %v561, %v557
    %v718 = vpack.c.b16 %v562, %v558
    %v719 = vpack.c.b16 %v563, %v559
    %v720 = vpack.c.b16 %v564, %v560
    %v721 = vpack.c.b16 %v569, %v565
    %v722 = vpack.c.b16 %v570, %v566
    %v723 = vpack.c.b16 %v571, %v567
    %v724 = vpack.c.b16 %v572, %v568
    %v725 = vpack.c.b16 %v577, %v573
    %v726 = vpack.c.b16 %v578, %v574
    %v727 = vpack.c.b16 %v579, %v575
    %v728 = vpack.c.b16 %v580, %v576
    %v729 = vpack.c.b16 %v585, %v581
    %v730 = vpack.c.b16 %v586, %v582
    %v731 = vpack.c.b16 %v587, %v583
    %v732 = vpack.c.b16 %v588, %v584
    %v733 = vpack.c.b16 %v593, %v589
    %v734 = vpack.c.b16 %v594, %v590
    %v735 = vpack.c.b16 %v595, %v591
    %v736 = vpack.c.b16 %v596, %v592
    %v737 = vpack.c.b16 %v601, %v597
    %v738 = vpack.c.b16 %v602, %v598
    %v739 = vpack.c.b16 %v603, %v599
    %v740 = vpack.c.b16 %v604, %v600
    %v741 = vpack.c.b16 %v609, %v605
    %v742 = vpack.c.b16 %v610, %v606
    %v743 = vpack.c.b16 %v611, %v607
    %v744 = vpack.c.b16 %v612, %v608
    %v745 = vpack.c.b16 %v617, %v613
    %v746 = vpack.c.b16 %v618, %v614
    %v747 = vpack.c.b16 %v619, %v615
    %v748 = vpack.c.b16 %v620, %v616
    %877 = vmatpush.bf16.msra.mxu0 %v649
    %878 = vmatpush.bf16.msra.mxu0 %v645
    %879 = vmatpush.bf16.msra.mxu0 %v641
    %880 = vmatpush.bf16.msra.mxu0 %v637
    %881 = vmatpush.bf16.msra.mxu0 %v633
    %882 = vmatpush.bf16.msra.mxu0 %v629
    %883 = vmatpush.bf16.msra.mxu0 %v625
    %884 = vmatpush.bf16.msra.mxu0 %v621
    %885 = vmatmul.bf16.gmra.mxu0 %v229
    %v886 = vpop.f32.mrf.mxu0
    %v887 = vadd.f32 0.0, %v886
    %v888 = vpop.f32.mrf.mxu0
    %v889 = vadd.f32 0.0, %v888
    %890 = vdwg.mxu0
    %891 = vmatpush.bf16.msra.mxu0 %v681
    %892 = vmatpush.bf16.msra.mxu0 %v677
    %893 = vmatpush.bf16.msra.mxu0 %v673
    %894 = vmatpush.bf16.msra.mxu0 %v669
    %895 = vmatpush.bf16.msra.mxu0 %v665
    %896 = vmatpush.bf16.msra.mxu0 %v661
    %897 = vmatpush.bf16.msra.mxu0 %v657
    %898 = vmatpush.bf16.msra.mxu0 %v653
    %899 = vmatmul.bf16.gmra.mxu0 %v230
    %v900 = vpop.f32.mrf.mxu0
    %v901 = vadd.f32 %v887, %v900
    %v902 = vpop.f32.mrf.mxu0
    %v903 = vadd.f32 %v889, %v902
    %904 = vdwg.mxu0
    %905 = vmatpush.bf16.msra.mxu0 %v713
    %906 = vmatpush.bf16.msra.mxu0 %v709
    %907 = vmatpush.bf16.msra.mxu0 %v705
    %908 = vmatpush.bf16.msra.mxu0 %v701
    %909 = vmatpush.bf16.msra.mxu0 %v697
    %910 = vmatpush.bf16.msra.mxu0 %v693
    %911 = vmatpush.bf16.msra.mxu0 %v689
    %912 = vmatpush.bf16.msra.mxu0 %v685
    %913 = vmatmul.bf16.gmra.mxu0 %v231
    %v914 = vpop.f32.mrf.mxu0
    %v915 = vadd.f32 %v901, %v914
    %v916 = vpop.f32.mrf.mxu0
    %v917 = vadd.f32 %v903, %v916
    %918 = vdwg.mxu0
    %919 = vmatpush.bf16.msra.mxu0 %v745
    %920 = vmatpush.bf16.msra.mxu0 %v741
    %921 = vmatpush.bf16.msra.mxu0 %v737
    %922 = vmatpush.bf16.msra.mxu0 %v733
    %923 = vmatpush.bf16.msra.mxu0 %v729
    %924 = vmatpush.bf16.msra.mxu0 %v725
    %925 = vmatpush.bf16.msra.mxu0 %v721
    %926 = vmatpush.bf16.msra.mxu0 %v717
    %927 = vmatmul.bf16.gmra.mxu0 %v232
    %v928 = vpop.f32.mrf.mxu0
    %v929 = vadd.f32 %v915, %v928
    %v930 = vpop.f32.mrf.mxu0
    %v931 = vadd.f32 %v917, %v930
    %932 = vdwg.mxu0
    %933 = vmatpush.bf16.msra.mxu0 %v650
    %934 = vmatpush.bf16.msra.mxu0 %v646
    %935 = vmatpush.bf16.msra.mxu0 %v642
    %936 = vmatpush.bf16.msra.mxu0 %v638
    %937 = vmatpush.bf16.msra.mxu0 %v634
    %938 = vmatpush.bf16.msra.mxu0 %v630
    %939 = vmatpush.bf16.msra.mxu0 %v626
    %940 = vmatpush.bf16.msra.mxu0 %v622
    %941 = vmatmul.bf16.gmra.mxu0 %v229
    %v942 = vpop.f32.mrf.mxu0
    %v943 = vadd.f32 0.0, %v942
    %v944 = vpop.f32.mrf.mxu0
    %v945 = vadd.f32 0.0, %v944
    %946 = vdwg.mxu0
    %947 = vmatpush.bf16.msra.mxu0 %v682
    %948 = vmatpush.bf16.msra.mxu0 %v678
    %949 = vmatpush.bf16.msra.mxu0 %v674
    %950 = vmatpush.bf16.msra.mxu0 %v670
    %951 = vmatpush.bf16.msra.mxu0 %v666
    %952 = vmatpush.bf16.msra.mxu0 %v662
    %953 = vmatpush.bf16.msra.mxu0 %v658
    %954 = vmatpush.bf16.msra.mxu0 %v654
    %955 = vmatmul.bf16.gmra.mxu0 %v230
    %v956 = vpop.f32.mrf.mxu0
    %v957 = vadd.f32 %v943, %v956
    %v958 = vpop.f32.mrf.mxu0
    %v959 = vadd.f32 %v945, %v958
    %960 = vdwg.mxu0
    %961 = vmatpush.bf16.msra.mxu0 %v714
    %962 = vmatpush.bf16.msra.mxu0 %v710
    %963 = vmatpush.bf16.msra.mxu0 %v706
    %964 = vmatpush.bf16.msra.mxu0 %v702
    %965 = vmatpush.bf16.msra.mxu0 %v698
    %966 = vmatpush.bf16.msra.mxu0 %v694
    %967 = vmatpush.bf16.msra.mxu0 %v690
    %968 = vmatpush.bf16.msra.mxu0 %v686
    %969 = vmatmul.bf16.gmra.mxu0 %v231
    %v970 = vpop.f32.mrf.mxu0
    %v971 = vadd.f32 %v957, %v970
    %v972 = vpop.f32.mrf.mxu0
    %v973 = vadd.f32 %v959, %v972
    %974 = vdwg.mxu0
    %975 = vmatpush.bf16.msra.mxu0 %v746
    %976 = vmatpush.bf16.msra.mxu0 %v742
    %977 = vmatpush.bf16.msra.mxu0 %v738
    %978 = vmatpush.bf16.msra.mxu0 %v734
    %979 = vmatpush.bf16.msra.mxu0 %v730
    %980 = vmatpush.bf16.msra.mxu0 %v726
    %981 = vmatpush.bf16.msra.mxu0 %v722
    %982 = vmatpush.bf16.msra.mxu0 %v718
    %983 = vmatmul.bf16.gmra.mxu0 %v232
    %v984 = vpop.f32.mrf.mxu0
    %v985 = vadd.f32 %v971, %v984
    %v986 = vpop.f32.mrf.mxu0
    %v987 = vadd.f32 %v973, %v986
    %988 = vdwg.mxu0
    %989 = vmatpush.bf16.msra.mxu0 %v651
    %990 = vmatpush.bf16.msra.mxu0 %v647
    %991 = vmatpush.bf16.msra.mxu0 %v643
    %992 = vmatpush.bf16.msra.mxu0 %v639
    %993 = vmatpush.bf16.msra.mxu0 %v635
    %994 = vmatpush.bf16.msra.mxu0 %v631
    %995 = vmatpush.bf16.msra.mxu0 %v627
    %996 = vmatpush.bf16.msra.mxu0 %v623
    %997 = vmatmul.bf16.gmra.mxu0 %v229
    %v998 = vpop.f32.mrf.mxu0
    %v999 = vadd.f32 0.0, %v998
    %v1000 = vpop.f32.mrf.mxu0
    %v1001 = vadd.f32 0.0, %v1000
    %1002 = vdwg.mxu0
    %1003 = vmatpush.bf16.msra.mxu0 %v683
    %1004 = vmatpush.bf16.msra.mxu0 %v679
    %1005 = vmatpush.bf16.msra.mxu0 %v675
    %1006 = vmatpush.bf16.msra.mxu0 %v671
    %1007 = vmatpush.bf16.msra.mxu0 %v667
    %1008 = vmatpush.bf16.msra.mxu0 %v663
    %1009 = vmatpush.bf16.msra.mxu0 %v659
    %1010 = vmatpush.bf16.msra.mxu0 %v655
    %1011 = vmatmul.bf16.gmra.mxu0 %v230
    %v1012 = vpop.f32.mrf.mxu0
    %v1013 = vadd.f32 %v999, %v1012
    %v1014 = vpop.f32.mrf.mxu0
    %v1015 = vadd.f32 %v1001, %v1014
    %1016 = vdwg.mxu0
    %1017 = vmatpush.bf16.msra.mxu0 %v715
    %1018 = vmatpush.bf16.msra.mxu0 %v711
    %1019 = vmatpush.bf16.msra.mxu0 %v707
    %1020 = vmatpush.bf16.msra.mxu0 %v703
    %1021 = vmatpush.bf16.msra.mxu0 %v699
    %1022 = vmatpush.bf16.msra.mxu0 %v695
    %1023 = vmatpush.bf16.msra.mxu0 %v691
    %1024 = vmatpush.bf16.msra.mxu0 %v687
    %1025 = vmatmul.bf16.gmra.mxu0 %v231
    %v1026 = vpop.f32.mrf.mxu0
    %v1027 = vadd.f32 %v1013, %v1026
    %v1028 = vpop.f32.mrf.mxu0
    %v1029 = vadd.f32 %v1015, %v1028
    %1030 = vdwg.mxu0
    %1031 = vmatpush.bf16.msra.mxu0 %v747
    %1032 = vmatpush.bf16.msra.mxu0 %v743
    %1033 = vmatpush.bf16.msra.mxu0 %v739
    %1034 = vmatpush.bf16.msra.mxu0 %v735
    %1035 = vmatpush.bf16.msra.mxu0 %v731
    %1036 = vmatpush.bf16.msra.mxu0 %v727
    %1037 = vmatpush.bf16.msra.mxu0 %v723
    %1038 = vmatpush.bf16.msra.mxu0 %v719
    %1039 = vmatmul.bf16.gmra.mxu0 %v232
    %v1040 = vpop.f32.mrf.mxu0
    %v1041 = vadd.f32 %v1027, %v1040
    %v1042 = vpop.f32.mrf.mxu0
    %v1043 = vadd.f32 %v1029, %v1042
    %1044 = vdwg.mxu0
    %1045 = vmatpush.bf16.msra.mxu0 %v652
    %1046 = vmatpush.bf16.msra.mxu0 %v648
    %1047 = vmatpush.bf16.msra.mxu0 %v644
    %1048 = vmatpush.bf16.msra.mxu0 %v640
    %1049 = vmatpush.bf16.msra.mxu0 %v636
    %1050 = vmatpush.bf16.msra.mxu0 %v632
    %1051 = vmatpush.bf16.msra.mxu0 %v628
    %1052 = vmatpush.bf16.msra.mxu0 %v624
    %1053 = vmatmul.bf16.gmra.mxu0 %v229
    %v1054 = vpop.f32.mrf.mxu0
    %v1055 = vadd.f32 0.0, %v1054
    %v1056 = vpop.f32.mrf.mxu0
    %v1057 = vadd.f32 0.0, %v1056
    %1058 = vdwg.mxu0
    %1059 = vmatpush.bf16.msra.mxu0 %v684
    %1060 = vmatpush.bf16.msra.mxu0 %v680
    %1061 = vmatpush.bf16.msra.mxu0 %v676
    %1062 = vmatpush.bf16.msra.mxu0 %v672
    %1063 = vmatpush.bf16.msra.mxu0 %v668
    %1064 = vmatpush.bf16.msra.mxu0 %v664
    %1065 = vmatpush.bf16.msra.mxu0 %v660
    %1066 = vmatpush.bf16.msra.mxu0 %v656
    %1067 = vmatmul.bf16.gmra.mxu0 %v230
    %v1068 = vpop.f32.mrf.mxu0
    %v1069 = vadd.f32 %v1055, %v1068
    %v1070 = vpop.f32.mrf.mxu0
    %v1071 = vadd.f32 %v1057, %v1070
    %1072 = vdwg.mxu0
    %1073 = vmatpush.bf16.msra.mxu0 %v716
    %1074 = vmatpush.bf16.msra.mxu0 %v712
    %1075 = vmatpush.bf16.msra.mxu0 %v708
    %1076 = vmatpush.bf16.msra.mxu0 %v704
    %1077 = vmatpush.bf16.msra.mxu0 %v700
    %1078 = vmatpush.bf16.msra.mxu0 %v696
    %1079 = vmatpush.bf16.msra.mxu0 %v692
    %1080 = vmatpush.bf16.msra.mxu0 %v688
    %1081 = vmatmul.bf16.gmra.mxu0 %v231
    %v1082 = vpop.f32.mrf.mxu0
    %v1083 = vadd.f32 %v1069, %v1082
    %v1084 = vpop.f32.mrf.mxu0
    %v1085 = vadd.f32 %v1071, %v1084
    %1086 = vdwg.mxu0
    %1087 = vmatpush.bf16.msra.mxu0 %v748
    %1088 = vmatpush.bf16.msra.mxu0 %v744
    %1089 = vmatpush.bf16.msra.mxu0 %v740
    %1090 = vmatpush.bf16.msra.mxu0 %v736
    %1091 = vmatpush.bf16.msra.mxu0 %v732
    %1092 = vmatpush.bf16.msra.mxu0 %v728
    %1093 = vmatpush.bf16.msra.mxu0 %v724
    %1094 = vmatpush.bf16.msra.mxu0 %v720
    %1095 = vmatmul.bf16.gmra.mxu0 %v232
    %v1096 = vpop.f32.mrf.mxu0
    %v1097 = vadd.f32 %v1083, %v1096
    %v1098 = vpop.f32.mrf.mxu0
    %v1099 = vadd.f32 %v1085, %v1098
    %1100 = vdwg.mxu0
    %1101 = vrot.lane.b32.xlu0 %v929, 1
    %v1102 = vpop.permute.xlu0 %1101
    %1103 = vrot.lane.b32.xlu0 %v931, 1
    %v1104 = vpop.permute.xlu0 %1103
    %1105 = vrot.lane.b32.xlu0 %v985, 1
    %v1106 = vpop.permute.xlu0 %1105
    %1107 = vrot.lane.b32.xlu0 %v987, 1
    %v1108 = vpop.permute.xlu0 %1107
    %1109 = vrot.lane.b32.xlu0 %v1041, 1
    %v1110 = vpop.permute.xlu0 %1109
    %1111 = vrot.lane.b32.xlu0 %v1043, 1
    %v1112 = vpop.permute.xlu0 %1111
    %1113 = vrot.lane.b32.xlu0 %v1097, 1
    %v1114 = vpop.permute.xlu0 %1113
    %1115 = vrot.lane.b32.xlu0 %v1099, 1
    %v1116 = vpop.permute.xlu0 %1115
    %v1117 = vlaneseq
    %v1118 = vand.u32 %v1117, 127
    %vm1119 = vcmp.lt.s32.totalorder %v1118, 1
    %v1120 = vsel %vm1119, %v1110, %v1114
    %v1121 = vsel %vm1119, %v1112, %v1116
    %v1122 = vsel %vm1119, %v1106, %v1110
    %v1123 = vsel %vm1119, %v1108, %v1112
    %v1124 = vsel %vm1119, %v1102, %v1106
    %v1125 = vsel %vm1119, %v1104, %v1108
    %v1126 = vsel %vm1119, %v1114, %v1102
    %v1127 = vsel %vm1119, %v1116, %v1104
    %1128 = vrot.lane.b32.xlu0 %v929, 127
    %v1129 = vpop.permute.xlu0 %1128
    %1130 = vrot.lane.b32.xlu0 %v931, 127
    %v1131 = vpop.permute.xlu0 %1130
    %1132 = vrot.lane.b32.xlu0 %v985, 127
    %v1133 = vpop.permute.xlu0 %1132
    %1134 = vrot.lane.b32.xlu0 %v987, 127
    %v1135 = vpop.permute.xlu0 %1134
    %1136 = vrot.lane.b32.xlu0 %v1041, 127
    %v1137 = vpop.permute.xlu0 %1136
    %1138 = vrot.lane.b32.xlu0 %v1043, 127
    %v1139 = vpop.permute.xlu0 %1138
    %1140 = vrot.lane.b32.xlu0 %v1097, 127
    %v1141 = vpop.permute.xlu0 %1140
    %1142 = vrot.lane.b32.xlu0 %v1099, 127
    %v1143 = vpop.permute.xlu0 %1142
    %vm1144 = vcmp.lt.s32.totalorder %v1118, 127
    %v1145 = vsel %vm1144, %v1137, %v1141
    %v1146 = vsel %vm1144, %v1139, %v1143
    %v1147 = vsel %vm1144, %v1133, %v1137
    %v1148 = vsel %vm1144, %v1135, %v1139
    %v1149 = vsel %vm1144, %v1129, %v1133
    %v1150 = vsel %vm1144, %v1131, %v1135
    %v1151 = vsel %vm1144, %v1141, %v1129
    %v1152 = vsel %vm1144, %v1143, %v1131
    %v1153 = vmax.f32 %v1126, %v1149
    %v1154 = vmax.f32 %v1124, %v1147
    %v1155 = vmax.f32 %v1122, %v1145
    %v1156 = vmax.f32 %v1120, %v1151
    %v1157 = vmax.f32 %v1127, %v1150
    %v1158 = vmax.f32 %v1125, %v1148
    %v1159 = vmax.f32 %v1123, %v1146
    %v1160 = vmax.f32 %v1121, %v1152
    %vm1161 = vcmp.gt.f32.partialorder %v929, %v1153
    %vm1162 = vcmp.gt.f32.partialorder %v985, %v1154
    %vm1163 = vcmp.gt.f32.partialorder %v1041, %v1155
    %vm1164 = vcmp.gt.f32.partialorder %v1097, %v1156
    %vm1165 = vcmp.gt.f32.partialorder %v931, %v1157
    %vm1166 = vcmp.gt.f32.partialorder %v987, %v1158
    %vm1167 = vcmp.gt.f32.partialorder %v1043, %v1159
    %vm1168 = vcmp.gt.f32.partialorder %v1099, %v1160
    %v1177 = vand.u32 %v929, 4294966784
    %v1178 = vand.u32 %v985, 4294966784
    %v1179 = vand.u32 %v1041, 4294966784
    %v1180 = vand.u32 %v1097, 4294966784
    %v1181 = vand.u32 %v931, 4294966784
    %v1182 = vand.u32 %v987, 4294966784
    %v1183 = vand.u32 %v1043, 4294966784
    %v1184 = vand.u32 %v1099, 4294966784
    %v1185 = vld [vmem:[#allocation7] sm:$0xf]
    %v1186 = vperm.slane %v1185, 0
    %v1187 = vperm.slane %v1185, 1
    %v1188 = vperm.slane %v1185, 2
    %v1189 = vperm.slane %v1185, 3
    %v1190 = vor.u32 %v1177, %v1186
    %v1191 = vor.u32 %v1178, %v1187
    %v1192 = vor.u32 %v1179, %v1188
    %v1193 = vor.u32 %v1180, %v1189
    %v1194 = vor.u32 %v1181, %v1186
    %v1195 = vor.u32 %v1182, %v1187
    %v1196 = vor.u32 %v1183, %v1188
    %v1197 = vor.u32 %v1184, %v1189
    %v1198 = vsel %vm1161, %v1190, 4294967295
    %v1199 = vsel %vm1162, %v1191, 4294967295
    %v1200 = vsel %vm1163, %v1192, 4294967295
    %v1201 = vsel %vm1164, %v1193, 4294967295
    %v1202 = vsel %vm1165, %v1194, 4294967295
    %v1203 = vsel %vm1166, %v1195, 4294967295
    %v1204 = vsel %vm1167, %v1196, 4294967295
    %v1205 = vsel %vm1168, %v1197, 4294967295
    %vm1206 = vcmp.gt.s32.totalorder %v1198, %v1199
    %v1207 = vsel %vm1206, %v1198, %v1199
    %vm1208 = vcmp.gt.s32.totalorder %v1202, %v1203
    %v1209 = vsel %vm1208, %v1202, %v1203
    %vm1210 = vcmp.lt.s32.totalorder %v1198, %v1199
    %v1211 = vsel %vm1210, %v1198, %v1199
    %vm1212 = vcmp.lt.s32.totalorder %v1202, %v1203
    %v1213 = vsel %vm1212, %v1202, %v1203
    %vm1214 = vcmp.gt.s32.totalorder %v1200, %v1201
    %v1215 = vsel %vm1214, %v1200, %v1201
    %vm1216 = vcmp.gt.s32.totalorder %v1204, %v1205
    %v1217 = vsel %vm1216, %v1204, %v1205
    %vm1218 = vcmp.lt.s32.totalorder %v1200, %v1201
    %v1219 = vsel %vm1218, %v1200, %v1201
    %vm1220 = vcmp.lt.s32.totalorder %v1204, %v1205
    %v1221 = vsel %vm1220, %v1204, %v1205
    %vm1222 = vcmp.gt.s32.totalorder %v1207, %v1215
    %v1223 = vsel %vm1222, %v1207, %v1215
    %vm1224 = vcmp.gt.s32.totalorder %v1209, %v1217
    %v1225 = vsel %vm1224, %v1209, %v1217
    %vm1226 = vcmp.lt.s32.totalorder %v1207, %v1215
    %v1227 = vsel %vm1226, %v1207, %v1215
    %vm1228 = vcmp.lt.s32.totalorder %v1209, %v1217
    %v1229 = vsel %vm1228, %v1209, %v1217
    %vm1230 = vcmp.gt.s32.totalorder %v1211, %v1219
    %v1231 = vsel %vm1230, %v1211, %v1219
    %vm1232 = vcmp.gt.s32.totalorder %v1213, %v1221
    %v1233 = vsel %vm1232, %v1213, %v1221
    %vm1234 = vcmp.gt.s32.totalorder %v1227, %v1231
    %v1235 = vsel %vm1234, %v1227, %v1231
    %vm1236 = vcmp.gt.s32.totalorder %v1229, %v1233
    %v1237 = vsel %vm1236, %v1229, %v1233
    %v1238 = vand.u32 %v1223, 65535
    %v1239 = vshra.s32 %v1223, 16
    %v1240 = vcvt.s32.f32 %v1238
    %v1241 = vcvt.s32.f32 %v1239
    %1242 = vmax.xlane.f32.xlu0 %v1241
    %v1243 = vpop.xlane.xlu0 %1242
    %vm1244 = vcmp.eq.f32.partialorder %v1241, %v1243
    %v1245 = vsel %vm1244, %v1240, -inf
    %1246 = vmax.xlane.f32.xlu0 %v1245
    %v1247 = vpop.xlane.xlu0 %1246
    %v1248 = vcvt.f32.s32 %v1247
    %v1249 = vcvt.f32.s32 %v1243
    %v1250 = vshll.u32 %v1249, 16
    %v1251 = vadd.s32 %v1250, %v1248
    %v1252 = vand.u32 %v1225, 65535
    %v1253 = vshra.s32 %v1225, 16
    %v1254 = vcvt.s32.f32 %v1252
    %v1255 = vcvt.s32.f32 %v1253
    %1256 = vmax.xlane.f32.xlu0 %v1255
    %v1257 = vpop.xlane.xlu0 %1256
    %vm1258 = vcmp.eq.f32.partialorder %v1255, %v1257
    %v1259 = vsel %vm1258, %v1254, -inf
    %1260 = vmax.xlane.f32.xlu0 %v1259
    %v1261 = vpop.xlane.xlu0 %1260
    %v1262 = vcvt.f32.s32 %v1261
    %v1263 = vcvt.f32.s32 %v1257
    %v1264 = vshll.u32 %v1263, 16
    %v1265 = vadd.s32 %v1264, %v1262
    %vm1266 = vcmp.eq.s32.totalorder %v1223, %v1251
    %vm1267 = vcmp.eq.s32.totalorder %v1225, %v1265
    %v1268 = vsel %vm1266, %v1235, %v1223
    %v1269 = vsel %vm1267, %v1237, %v1225
    %v1270 = vand.u32 %v1268, 65535
    %v1271 = vshra.s32 %v1268, 16
    %v1272 = vcvt.s32.f32 %v1270
    %v1273 = vcvt.s32.f32 %v1271
    %1274 = vmax.xlane.f32.xlu0 %v1273
    %v1275 = vpop.xlane.xlu0 %1274
    %vm1276 = vcmp.eq.f32.partialorder %v1273, %v1275
    %v1277 = vsel %vm1276, %v1272, -inf
    %1278 = vmax.xlane.f32.xlu0 %v1277
    %v1279 = vpop.xlane.xlu0 %1278
    %v1280 = vcvt.f32.s32 %v1279
    %v1281 = vcvt.f32.s32 %v1275
    %v1282 = vshll.u32 %v1281, 16
    %v1283 = vadd.s32 %v1282, %v1280
    %v1284 = vand.u32 %v1269, 65535
    %v1285 = vshra.s32 %v1269, 16
    %v1286 = vcvt.s32.f32 %v1284
    %v1287 = vcvt.s32.f32 %v1285
    %1288 = vmax.xlane.f32.xlu0 %v1287
    %v1289 = vpop.xlane.xlu0 %1288
    %vm1290 = vcmp.eq.f32.partialorder %v1287, %v1289
    %v1291 = vsel %vm1290, %v1286, -inf
    %1292 = vmax.xlane.f32.xlu0 %v1291
    %v1293 = vpop.xlane.xlu0 %1292
    %v1294 = vcvt.f32.s32 %v1293
    %v1295 = vcvt.f32.s32 %v1289
    %v1296 = vshll.u32 %v1295, 16
    %v1297 = vadd.s32 %v1296, %v1294
    %v1298 = vand.u32 %v1251, 511
    %v1299 = vand.u32 %v1265, 511
    %v1300 = vcvt.s32.f32 %v1298
    %v1301 = vcvt.s32.f32 %v1299
    %v1302 = vand.u32 %v1283, 511
    %v1303 = vand.u32 %v1297, 511
    %v1304 = vcvt.s32.f32 %v1302
    %v1305 = vcvt.s32.f32 %v1303
    %v1306 = vand.u32 %v1251, 4294966784
    %v1307 = vand.u32 %v1265, 4294966784
    %v1310 = vand.u32 %v1283, 4294966784
    %v1311 = vand.u32 %v1297, 4294966784
    %vm1314 = vcmp.ge.s32.totalorder %v1283, 0
    %vm1315 = vcmp.ge.s32.totalorder %v1297, 0
    %vm1316 = vcmp.ge.f32.partialorder %v1310, 0.1
    %vm1317 = vcmp.ge.f32.partialorder %v1311, 0.1
    %vm1318 = vmand %vm1314, %vm1316
    %vm1319 = vmand %vm1315, %vm1317
    %v1320 = vadd.f32 %v1300, 440.0
    %v1321 = vadd.f32 %v1301, 440.0
    %v1322 = vadd.f32 %v1304, 440.0
    %v1323 = vadd.f32 %v1305, 440.0
    %v1324 = vrcp.pop %v1320
    %v1325 = vmul.f32 %v1320, %v1324
    %v1326 = vsub.f32 1.0, %v1325
    %v1327 = vmul.f32 %v1324, %v1326
    %v1328 = vadd.f32 %v1324, %v1327
    %vm1329 = vweird.f32 %v1320
    %vm1330 = vweird.f32 %v1324
    %vm1331 = vmor %vm1329, %vm1330
    %v1332 = vsel %vm1331, %v1324, %v1328
    %v1333 = vand.u32 2147483647, %v1320
    %vm1334 = vcmp.eq.f32.partialorder %v1333, 8.507059e+37
    %v1335 = vand.u32 %v1320, 2147483648
    %v1336 = vor.u32 1.1754944e-38, %v1335
    %v1337 = vsel %vm1334, %v1336, %v1332
    %v1338 = vmul.f32 %v1322, %v1337
    %v1339 = vrcp.pop %v1321
    %v1340 = vmul.f32 %v1321, %v1339
    %v1341 = vsub.f32 1.0, %v1340
    %v1342 = vmul.f32 %v1339, %v1341
    %v1343 = vadd.f32 %v1339, %v1342
    %vm1344 = vweird.f32 %v1321
    %vm1345 = vweird.f32 %v1339
    %vm1346 = vmor %vm1344, %vm1345
    %v1347 = vsel %vm1346, %v1339, %v1343
    %v1348 = vand.u32 2147483647, %v1321
    %vm1349 = vcmp.eq.f32.partialorder %v1348, 8.507059e+37
    %v1350 = vand.u32 %v1321, 2147483648
    %v1351 = vor.u32 1.1754944e-38, %v1350
    %v1352 = vsel %vm1349, %v1351, %v1347
    %v1353 = vmul.f32 %v1323, %v1352
    %v1354 = vlog2.pop %v1338
    %v1355 = vmul.f32 %v1354, 0.6931472
    %v1356 = vlog2.pop %v1353
    %v1357 = vmul.f32 %v1356, 0.6931472
    %v1358 = vrcp.pop 0.6931472
    %v1359 = vmul.f32 0.6931472, %v1358
    %v1360 = vsub.f32 1.0, %v1359
    %v1361 = vmul.f32 %v1358, %v1360
    %v1362 = vadd.f32 %v1358, %v1361
    %vm1363 = vweird.f32 %v1358
    %v1364 = vsel %vm1363, %v1358, %v1362
    %v1365 = vmul.f32 %v1355, %v1364
    %v1366 = vmul.f32 %v1357, %v1364
    %v1367 = vand.u32 2147483647, %v1365
    %v1368 = vand.u32 2147483647, %v1366
    %v1369 = vmul.f32 %v1367, 12.0
    %v1370 = vmul.f32 %v1368, 12.0
    %v1371 = vcvt.f32.s32.to.zero.pseudo %v1369
    %v1372 = vcvt.f32.s32.to.zero.pseudo %v1370
    %vm1373 = vcmp.lt.s32.totalorder %v1371, 12
    %v1374 = vsel %vm1373, %v1371, 12
    %vm1375 = vcmp.lt.s32.totalorder %v1372, 12
    %v1376 = vsel %vm1375, %v1372, 12
    %vm1377 = vcmp.eq.s32.totalorder %v1118, %v1374
    %vm1378 = vcmp.eq.s32.totalorder %v1118, %v1376
    %v1379 = vld [vmem:[%s3] sm:$0x1]
    %v1381 = vperm.slane %v1379, 0
    %v1383 = vsel %vm1377, %v1381, 0.0
    %v1384 = vsel %vm1378, %v1381, 0.0
    %vm1385 = vcmask 130048
    %v1386 = vsel %vm1385, %v1383, 0.0
    %1387 = vadd.xlane.f32.xlu0 %v1386
    %v1388 = vpop.xlane.xlu0 %1387
    %v1389 = vsel %vm1385, %v1384, 0.0
    %1390 = vadd.xlane.f32.xlu0 %v1389
    %v1391 = vpop.xlane.xlu0 %1390
    %v1392 = vmax.f32 %v1306, %v1310
    %v1393 = vmax.f32 %v1307, %v1311
    %v1394 = vsub.f32 %v1306, %v1310
    %v1395 = vsub.f32 %v1307, %v1311
    %v1396 = vmul.f32 %v1394, %v1394
    %v1397 = vmul.f32 %v1395, %v1395
    %v1398 = vsub.f32 220.0, %v1392
    %v1399 = vsub.f32 220.0, %v1393
    %v1400 = vmul.f32 %v1398, %v1398
    %v1401 = vmul.f32 %v1399, %v1399
    %v1402 = vadd.f32 %v1396, %v1400
    %v1403 = vadd.f32 %v1397, %v1401
    %v1404 = vsub.f32 0.0, %v1402
    %v1405 = vsub.f32 0.0, %v1403
    %v1406 = vmul.f32 %v1404, 0.0001
    %v1407 = vmul.f32 %v1405, 0.0001
    %v1408 = vmul.f32 %v1406, 1.442695
    %v1409 = vpow.pop %v1408
    %v1410 = vmul.f32 %v1407, 1.442695
    %v1411 = vpow.pop %v1410
    %v1412 = vmul.f32 %v1388, %v1409
    %v1413 = vmul.f32 %v1391, %v1411
    %v1414 = vsel %vm1318, %v1412, 0.0
    %v1415 = vsel %vm1319, %v1413, 0.0
    %vm1416 = vcmask 7168
    %1417 = vst.msk [vmem:[%s4] sm:$0xff] %vm1416, %v1414
    %1418 = vst.msk [vmem:[%s4 + $0x8] sm:$0xff] %vm1416, %v1415
    // Predicated region
    $region30: #{tpu_custom_call.1} parent=1 // pred_check
      _
    $region31: #{tpu_custom_call.1} parent=1 // pred_check_branch
      %1420 = sbr.rel (0) target = $region33
    $region32: #{tpu_custom_call.1} parent=1 // pred_region
      _
    $region33: #{tpu_custom_call.1} parent=1 // pred_fallthru
      _
    // Predicated region
    $region34: #{tpu_custom_call.1} parent=1 // pred_check
      _
    $region35: #{tpu_custom_call.1} parent=1 // pred_check_branch
      %1422 = sbr.rel (0) target = $region37
    $region36: #{tpu_custom_call.1} parent=1 // pred_region
      _
    $region37: #{tpu_custom_call.1} parent=1 // pred_fallthru
      _
    %1423 = vsyncpa [#allocation4], 1
    %1424 = vsyncpa [#allocation6], 1

</llo_original>
